<compile_context>
chip_gen: v7x
topology: tpu7x:2x2x1
jax: 0.10.0
libtpu: 0.0.40
codegen_flags: <defaults>
</compile_context>

<pallas_src>
import jax
import jax.numpy as jnp
from jax.experimental import pallas as pl
from jax.experimental.pallas import tpu as pltpu


# Contract the last dim of both operands: result = A @ B^T  (NT matmul).
_NT_DIM_NUMBERS = (((1,), (1,)), ((), ()))


def _round_up(a, m):
    return ((a + m - 1) // m) * m


def fm_kernel(x_ref, u_ref, wi_ref, bi_ref, wu_ref, bu_ref, out_ref):
    x = x_ref[...]                      # (tm, x_dim)  f32 or bf16
    u = u_ref[...]                      # (tm, u_dim)  f32 or bf16

    # Full MXU precision for f32 operands (matches f32 nn.Linear closely);
    # bf16 operands are already single-pass native.
    prec = (jax.lax.Precision.HIGHEST if x.dtype == jnp.float32
            else jax.lax.Precision.DEFAULT)

    # Factor-major embeddings: (Fp, tm) with the batch on lanes.
    #   x_emb_t = W_item_aug @ x^T + b_item_aug
    #   u_emb_t = W_user_aug @ u^T + b_user_aug
    x_emb_t = jax.lax.dot_general(
        wi_ref[...], x, _NT_DIM_NUMBERS,
        preferred_element_type=jnp.float32,
        precision=prec) + bi_ref[...]                            # (Fp, tm)
    u_emb_t = jax.lax.dot_general(
        wu_ref[...], u, _NT_DIM_NUMBERS,
        preferred_element_type=jnp.float32,
        precision=prec) + bu_ref[...]                            # (Fp, tm)

    # Per-sample dot over factors (sublane reduction) -> lane-dense (1, tm) row.
    # The augmented factor row already carries the linear term, so this is
    # scores_lin + scores_inter.
    scores = jnp.sum(x_emb_t * u_emb_t, axis=0, keepdims=True)   # (1, tm)
    out_ref[...] = scores.astype(out_ref.dtype)


def _augment_params(params, f_pad, weight_dtype):
    """Fold Linear(x_dim->1) into the embedding weights and transpose them.

    Factor-major weights / biases:
      wi_t: (f_pad, x_dim)   row f<F = w_item[:, f],  row F = w_lin[:, 0]
      bi  : (f_pad, 1)       row f<F = b_item[f],     row F = b_lin
      wu_t: (f_pad, u_dim)   row f<F = w_user[:, f],  row F = 0
      bu  : (f_pad, 1)       row f<F = b_user[f],     row F = 1
    so that sum_f x_emb_t[f] * u_emb_t[f] == scores_inter + scores_lin.
    Padding rows (>= F+1) are exactly zero on both sides.  Weights optionally
    cast to bf16 for streaming; biases stay f32 (added after f32 accumulation).
    """
    w_lin, b_lin = params["w_lin"], params["b_lin"]        # (x_dim,1), (1,1)
    w_item, b_item = params["w_item"], params["b_item"]    # (x_dim,F), (1,F)
    w_user, b_user = params["w_user"], params["b_user"]    # (u_dim,F), (1,F)
    x_dim, F = w_item.shape
    u_dim = w_user.shape[0]

    wi_t = jnp.zeros((f_pad, x_dim), jnp.float32)
    wi_t = wi_t.at[:F, :].set(w_item.T.astype(jnp.float32))
    wi_t = wi_t.at[F, :].set(w_lin[:, 0].astype(jnp.float32))
    bi = jnp.zeros((f_pad, 1), jnp.float32)
    bi = bi.at[:F, 0].set(b_item[0].astype(jnp.float32))
    bi = bi.at[F, 0].set(b_lin[0, 0].astype(jnp.float32))

    wu_t = jnp.zeros((f_pad, u_dim), jnp.float32)
    wu_t = wu_t.at[:F, :].set(w_user.T.astype(jnp.float32))
    bu = jnp.zeros((f_pad, 1), jnp.float32)
    bu = bu.at[:F, 0].set(b_user[0].astype(jnp.float32))
    bu = bu.at[F, 0].set(1.0)

    return wi_t.astype(weight_dtype), bi, wu_t.astype(weight_dtype), bu


def fm_forward(x, u, params, *, tm=4096, stream_bf16=False):
    """Pallas-backed FMBaseline.forward.

    x: (B, x_dim), u: (B, u_dim) -> scores (B, 1) f32.
    params: dict with w_lin (x_dim,1), b_lin (1,1), w_item (x_dim,F),
            b_item (1,F), w_user (u_dim,F), b_user (1,F)
            (PyTorch nn.Linear weights pre-transposed to (in, out)).
    tm: batch tile (multiple of 128); sweep 2048-8192 for large B.
    stream_bf16: cast x/u and the embedding weights to bf16 before streaming
            (halves HBM read traffic; accumulation stays f32).
    """
    B, x_dim = x.shape
    B_u, u_dim = u.shape
    assert B == B_u, "x and u must have the same batch size"
    F = params["w_item"].shape[1]
    f_pad = _round_up(F + 1, 8)            # +1 fused linear row, pad to 8

    # --- batch tiling -------------------------------------------------------
    tm = max(128, (int(tm) // 128) * 128)
    # Keep >= 2 grid steps when B allows it so both v7x TensorCores get work.
    tm = min(tm, max(128, _round_up(pl.cdiv(B, 2), 128)))

    if B <= tm:
        # Single-step grid: use the exact batch as the tile (whole-array
        # blocks, no padding, no partial blocks).  Only reachable for small B.
        tm = B
        grid_steps = 1
    else:
        # No input padding: Pallas handles the partial last block; garbage
        # rows only affect output lanes >= B, which are sliced off below.
        grid_steps = pl.cdiv(B, tm)
    B_pad = grid_steps * tm                # output padded -> lane-dense stores

    # --- operand dtypes -----------------------------------------------------
    in_dtype = jnp.bfloat16 if stream_bf16 else jnp.float32
    if x.dtype != in_dtype:
        x = x.astype(in_dtype)
    if u.dtype != in_dtype:
        u = u.astype(in_dtype)
    wi_t, bi, wu_t, bu = _augment_params(params, f_pad, in_dtype)
    in_itemsize = jnp.dtype(in_dtype).itemsize

    # --- pipelining depth for the streamed tiles ----------------------------
    use_multibuf = (tm <= 1024) and (grid_steps >= 3)

    def stream_spec(shape, index_map):
        if use_multibuf:
            return pl.BlockSpec(shape, index_map, pipeline_mode=pl.Buffered(3))
        return pl.BlockSpec(shape, index_map)

    # --- VMEM budget (explicit; v7x has only 64 MiB physical) ---------------
    n_buf = 3 if use_multibuf else 2
    vmem_need = (n_buf * tm * (x_dim + u_dim) * in_itemsize   # streamed tiles
                 + 2 * tm * 4                                  # output block
                 + 2 * f_pad * (x_dim + u_dim) * in_itemsize   # weights
                 + 2 * f_pad * 2 * 4                           # biases
                 + (1 << 20))                                  # headroom
    vmem_limit = int(min(max(2 * vmem_need, 32 << 20), 64 << 20))

    cost = pl.CostEstimate(
        flops=int(2 * B * f_pad * (x_dim + u_dim) + 3 * B * f_pad),
        transcendentals=0,
        bytes_accessed=int(B * (x_dim + u_dim) * in_itemsize
                           + B_pad * 4
                           + f_pad * (x_dim + u_dim + 2) * 4),
    )

    out = pl.pallas_call(
        fm_kernel,
        out_shape=jax.ShapeDtypeStruct((1, B_pad), jnp.float32),
        grid_spec=pltpu.PrefetchScalarGridSpec(
            num_scalar_prefetch=0,
            grid=(grid_steps,),
            in_specs=[
                stream_spec((tm, x_dim), lambda i: (i, 0)),       # x tile
                stream_spec((tm, u_dim), lambda i: (i, 0)),       # u tile
                pl.BlockSpec((f_pad, x_dim), lambda i: (0, 0)),   # W_item_aug^T
                pl.BlockSpec((f_pad, 1), lambda i: (0, 0)),       # b_item_aug
                pl.BlockSpec((f_pad, u_dim), lambda i: (0, 0)),   # W_user_aug^T
                pl.BlockSpec((f_pad, 1), lambda i: (0, 0)),       # b_user_aug
            ],
            out_specs=pl.BlockSpec((1, tm), lambda i: (0, i)),    # lane-dense
        ),
        compiler_params=pltpu.CompilerParams(
            dimension_semantics=("parallel",),                    # megacore-shardable
            vmem_limit_bytes=vmem_limit),
        cost_estimate=cost,
    )(x, u, wi_t, bi, wu_t, bu)

    return out[0, :B][:, None]                                    # (B, 1)


def init_params(key, x_dim, u_dim, n_factors):
    """Deterministic init mimicking nn.Linear's U(-1/sqrt(in), 1/sqrt(in)).

    Weights stored as (in_dim, out_dim) == PyTorch weight.T, biases as (1, out)."""
    ks = jax.random.split(key, 6)

    def lin(kw, kb, d_in, d_out):
        bound = 1.0 / jnp.sqrt(jnp.float32(d_in))
        w = jax.random.uniform(kw, (d_in, d_out), jnp.float32, -bound, bound)
        b = jax.random.uniform(kb, (1, d_out), jnp.float32, -bound, bound)
        return w, b

    w_lin, b_lin = lin(ks[0], ks[1], x_dim, 1)
    w_item, b_item = lin(ks[2], ks[3], x_dim, n_factors)
    w_user, b_user = lin(ks[4], ks[5], u_dim, n_factors)
    return dict(w_lin=w_lin, b_lin=b_lin,
                w_item=w_item, b_item=b_item,
                w_user=w_user, b_user=b_user)


def fm_forward_ref(x, u, p):
    """Pure-JAX reference (original FMBaseline formulation), high precision."""
    hp = jax.lax.Precision.HIGHEST
    scores_lin = jnp.dot(x, p["w_lin"], precision=hp) + p["b_lin"]
    x_emb = jnp.dot(x, p["w_item"], precision=hp) + p["b_item"]
    u_emb = jnp.dot(u, p["w_user"], precision=hp) + p["b_user"]
    scores_inter = jnp.sum(u_emb * x_emb, axis=-1, keepdims=True)
    return scores_lin + scores_inter


if __name__ == "__main__":
    key = jax.random.PRNGKey(0)
    k_x, k_u, k_p, k_x2, k_u2, k_x3, k_u3 = jax.random.split(key, 7)

    # Small shapes consistent with FMBaseline(x_dim, u_dim, n_factors).
    B, x_dim, u_dim, n_factors = 16, 32, 16, 8
    x = jax.random.normal(k_x, (B, x_dim), jnp.float32)
    u = jax.random.normal(k_u, (B, u_dim), jnp.float32)
    params = init_params(k_p, x_dim, u_dim, n_factors)

    scores = jax.block_until_ready(fm_forward(x, u, params))
    ref = fm_forward_ref(x, u, params)
    assert scores.shape == (B, 1)
    assert jnp.allclose(scores, ref, atol=2e-4, rtol=2e-4), (
        f"mismatch: max abs err {jnp.max(jnp.abs(scores - ref))}")

    # Non-multiple batch, multi-step grid, UNPADDED inputs with a partial last
    # block (tm clamps to 256 here -> grid=2, output padded to 512 lanes).
    B2 = 300
    x2 = jax.random.normal(k_x2, (B2, x_dim), jnp.float32)
    u2 = jax.random.normal(k_u2, (B2, u_dim), jnp.float32)
    scores2 = jax.block_until_ready(fm_forward(x2, u2, params))
    ref2 = fm_forward_ref(x2, u2, params)
    assert scores2.shape == (B2, 1)
    assert jnp.allclose(scores2, ref2, atol=2e-4, rtol=2e-4), (
        f"mismatch: max abs err {jnp.max(jnp.abs(scores2 - ref2))}")

    # Modest tile + deep grid exercises the Buffered(3) pipeline path.
    B3 = 700
    x3 = jax.random.normal(k_x3, (B3, x_dim), jnp.float32)
    u3 = jax.random.normal(k_u3, (B3, u_dim), jnp.float32)
    scores3 = jax.block_until_ready(fm_forward(x3, u3, params, tm=128))
    ref3 = fm_forward_ref(x3, u3, params)
    assert scores3.shape == (B3, 1)
    assert jnp.allclose(scores3, ref3, atol=2e-4, rtol=2e-4), (
        f"mismatch: max abs err {jnp.max(jnp.abs(scores3 - ref3))}")

    # bf16 streaming path (HBM-traffic lever, biggest on v5e); looser tolerance.
    scores4 = jax.block_until_ready(fm_forward(x2, u2, params, stream_bf16=True))
    assert scores4.shape == (B2, 1)
    assert jnp.allclose(scores4, ref2, atol=1.5e-1, rtol=5e-2), (
        f"bf16 mismatch: max abs err {jnp.max(jnp.abs(scores4 - ref2))}")

    print("KERNEL_OK")
</pallas_src>

<mosaic_0001>
module attributes {stable_mosaic.version = 11 : i64} {
  func.func @fm_kernel(%arg0: i32, %arg1: memref<16x32xf32, #tpu.memory_space<vmem>>, %arg2: memref<16x16xf32, #tpu.memory_space<vmem>>, %arg3: memref<16x32xf32, #tpu.memory_space<vmem>>, %arg4: memref<16x1xf32, #tpu.memory_space<vmem>>, %arg5: memref<16x16xf32, #tpu.memory_space<vmem>>, %arg6: memref<16x1xf32, #tpu.memory_space<vmem>>, %arg7: memref<1x16xf32, #tpu.memory_space<vmem>>) attributes {dimension_semantics = [#tpu.dimension_semantics<parallel>], iteration_bounds = array<i64: 1>, scalar_prefetch = 0 : i64, scratch_operands = 0 : i64, tpu.core_type = #tpu.core_type<tc>, window_params = [{transform_indices = @transform_0, window_bounds = array<i64: 16, 32>}, {transform_indices = @transform_1, window_bounds = array<i64: 16, 16>}, {pipeline_mode = #tpu.pipeline_mode<synchronous>, transform_indices = @transform_2, window_bounds = array<i64: 16, 32>}, {pipeline_mode = #tpu.pipeline_mode<synchronous>, transform_indices = @transform_3, window_bounds = array<i64: 16, 1>}, {pipeline_mode = #tpu.pipeline_mode<synchronous>, transform_indices = @transform_4, window_bounds = array<i64: 16, 16>}, {pipeline_mode = #tpu.pipeline_mode<synchronous>, transform_indices = @transform_5, window_bounds = array<i64: 16, 1>}, {transform_indices = @transform_6, window_bounds = array<i64: 1, 16>}]} {
    %c0 = arith.constant 0 : index
    %c0_0 = arith.constant 0 : index
    %0 = vector.load %arg1[%c0, %c0_0] : memref<16x32xf32, #tpu.memory_space<vmem>>, vector<16x32xf32>
    %c0_1 = arith.constant 0 : index
    %c0_2 = arith.constant 0 : index
    %1 = vector.load %arg2[%c0_1, %c0_2] : memref<16x16xf32, #tpu.memory_space<vmem>>, vector<16x16xf32>
    %c0_3 = arith.constant 0 : index
    %c0_4 = arith.constant 0 : index
    %2 = vector.load %arg3[%c0_3, %c0_4] : memref<16x32xf32, #tpu.memory_space<vmem>>, vector<16x32xf32>
    %cst = arith.constant dense<0.000000e+00> : vector<16x16xf32>
    %3 = tpu.matmul %2, %0, %cst {dimension_numbers = #tpu.dot_dimension_numbers<[1], [1], [0], [0], [0, 0, 1, 0], [], []>, precision = #tpu.contract_precision<fp32>} : vector<16x32xf32>, vector<16x32xf32>, vector<16x16xf32> -> vector<16x16xf32>
    %c0_5 = arith.constant 0 : index
    %c0_6 = arith.constant 0 : index
    %4 = vector.load %arg4[%c0_5, %c0_6] : memref<16x1xf32, #tpu.memory_space<vmem>>, vector<16x1xf32>
    %5 = vector.broadcast %4 : vector<16x1xf32> to vector<16x16xf32>
    %6 = arith.addf %3, %5 : vector<16x16xf32>
    %c0_7 = arith.constant 0 : index
    %c0_8 = arith.constant 0 : index
    %7 = vector.load %arg5[%c0_7, %c0_8] : memref<16x16xf32, #tpu.memory_space<vmem>>, vector<16x16xf32>
    %cst_9 = arith.constant dense<0.000000e+00> : vector<16x16xf32>
    %8 = tpu.matmul %7, %1, %cst_9 {dimension_numbers = #tpu.dot_dimension_numbers<[1], [1], [0], [0], [0, 0, 1, 0], [], []>, precision = #tpu.contract_precision<fp32>} : vector<16x16xf32>, vector<16x16xf32>, vector<16x16xf32> -> vector<16x16xf32>
    %c0_10 = arith.constant 0 : index
    %c0_11 = arith.constant 0 : index
    %9 = vector.load %arg6[%c0_10, %c0_11] : memref<16x1xf32, #tpu.memory_space<vmem>>, vector<16x1xf32>
    %10 = vector.broadcast %9 : vector<16x1xf32> to vector<16x16xf32>
    %11 = arith.addf %8, %10 : vector<16x16xf32>
    %12 = arith.mulf %6, %11 : vector<16x16xf32>
    %cst_12 = arith.constant dense<0.000000e+00> : vector<16xf32>
    %13 = vector.multi_reduction <add>, %12, %cst_12 [0] : vector<16x16xf32> to vector<16xf32>
    %14 = vector.shape_cast %13 : vector<16xf32> to vector<1x16xf32>
    %c0_13 = arith.constant 0 : index
    %c0_14 = arith.constant 0 : index
    %15 = vector.load %arg7[%c0_13, %c0_14] : memref<1x16xf32, #tpu.memory_space<vmem>>, vector<1x16xf32>
    tpu.vector_store %arg7[%c0_13, %c0_14], %14 {strides = array<i32>} : memref<1x16xf32, #tpu.memory_space<vmem>>, vector<1x16xf32>,
    return
  }
  func.func @transform_0(%arg0: i32) -> (i32, i32) {
    %c0_i32 = arith.constant 0 : i32
    %c0_i32_0 = arith.constant 0 : i32
    return %arg0, %c0_i32 : i32, i32
  }
  func.func @transform_1(%arg0: i32) -> (i32, i32) {
    %c0_i32 = arith.constant 0 : i32
    %c0_i32_0 = arith.constant 0 : i32
    return %arg0, %c0_i32 : i32, i32
  }
  func.func @transform_2(%arg0: i32) -> (i32, i32) {
    %c0_i32 = arith.constant 0 : i32
    %c0_i32_0 = arith.constant 0 : i32
    %c0_i32_1 = arith.constant 0 : i32
    return %c0_i32, %c0_i32_0 : i32, i32
  }
  func.func @transform_3(%arg0: i32) -> (i32, i32) {
    %c0_i32 = arith.constant 0 : i32
    %c0_i32_0 = arith.constant 0 : i32
    %c0_i32_1 = arith.constant 0 : i32
    return %c0_i32, %c0_i32_0 : i32, i32
  }
  func.func @transform_4(%arg0: i32) -> (i32, i32) {
    %c0_i32 = arith.constant 0 : i32
    %c0_i32_0 = arith.constant 0 : i32
    %c0_i32_1 = arith.constant 0 : i32
    return %c0_i32, %c0_i32_0 : i32, i32
  }
  func.func @transform_5(%arg0: i32) -> (i32, i32) {
    %c0_i32 = arith.constant 0 : i32
    %c0_i32_0 = arith.constant 0 : i32
    %c0_i32_1 = arith.constant 0 : i32
    return %c0_i32, %c0_i32_0 : i32, i32
  }
  func.func @transform_6(%arg0: i32) -> (i32, i32) {
    %c0_i32 = arith.constant 0 : i32
    %c0_i32_0 = arith.constant 0 : i32
    return %c0_i32, %arg0 : i32, i32
  }
}

</mosaic_0001>

<llo_original>
// kernel: tpu_custom_call.1
$region0: #{tpu_custom_call.1}
  #allocation0 [shape = 'u32[]', space=smem, size = 0x4, offset = 0x4, fixed_abs, tag = 'smem constant byte address 0x4 - core index']
  #allocation1 [shape = 'u32[144,128]{1,0:T(1,128)}', space=vmem, size = 0x12000, scoped, tag = 'internal scratch']
  %s0 = inlined_call_operand.vmem [shape: f32[16,32], index: 0, kind: input, shape index: {}]
  %s1 = inlined_call_operand.vmem [shape: f32[16,16], index: 1, kind: input, shape index: {}]
  %s2 = inlined_call_operand.hbm [shape: f32[16,32], index: 2, kind: input, shape index: {}]
  %s3 = inlined_call_operand.vmem [shape: f32[16,1], index: 3, kind: input, shape index: {}]
  %s4 = inlined_call_operand.vmem [shape: f32[16,16], index: 4, kind: input, shape index: {}]
  %s5 = inlined_call_operand.vmem [shape: f32[16,1], index: 5, kind: input, shape index: {}]
  %s6 = inlined_call_operand.hbm [shape: f32[1,16], index: 6, kind: output, shape index: {}]
  %s7 = sld [smem:[#allocation0]]
  $region38: #{tpu_custom_call.1} parent=0
    _
  %s9 = ssub.s32 1, %s7
  %s10 = scalar_select 0, %s9, %s7
  $region1: #{tpu_custom_call.1} parent=0
    #allocation2 [shape = 'u8[8192]{0}', space=vmem, size = 0x2000, scoped, tag = 'input window, operand 2, single buffered']
    #allocation3 [shape = 's32[1]{0}', space=sflag, size = 0x4, scoped, tag = 'scoped memory for tpu_custom_call.1']
    #allocation4 [shape = 's32[1]{0}', space=sflag, size = 0x4, scoped, tag = 'scoped memory for tpu_custom_call.1']
    #allocation5 [shape = 'u8[512]{0}', space=vmem, size = 0x400, scoped, tag = 'output window, operand 0, single buffered']
    %11 = vsyncpa [#allocation3], 0
    %12 = vsyncpa [#allocation4], 0
    // Predicated region
    $region2: #{tpu_custom_call.1} parent=1 // pred_check
      _
    $region3: #{tpu_custom_call.1} parent=1 // pred_check_branch
      %14 = sbr.rel (0) target = $region5
    $region4: #{tpu_custom_call.1} parent=1 // pred_region
      _
    $region5: #{tpu_custom_call.1} parent=1 // pred_fallthru
      _
    // Predicated region
    $region6: #{tpu_custom_call.1} parent=1 // pred_check
      _
    $region7: #{tpu_custom_call.1} parent=1 // pred_check_branch
      %16 = sbr.rel (0) target = $region9
    $region8: #{tpu_custom_call.1} parent=1 // pred_region
      _
    $region9: #{tpu_custom_call.1} parent=1 // pred_fallthru
      _
    // Predicated region
    $region10: #{tpu_custom_call.1} parent=1 // pred_check
      _
    $region11: #{tpu_custom_call.1} parent=1 // pred_check_branch
      %18 = sbr.rel (0) target = $region13
    $region12: #{tpu_custom_call.1} parent=1 // pred_region
      %s20 = ssub.s32 256, 256
      %21 = vsyncadd [#allocation3], %s20
      %s22 = sshll.u32 [#allocation2], 4
      %s23 = int_to_ptr.vmem [resolvable:$true] %s22
      %28 = dma.hbm_to_vmem [thread:$0]  %s2, 256, %s23, [#allocation3], 128, 128, 8
    $region13: #{tpu_custom_call.1} parent=1 // pred_fallthru
      _
    // Predicated region
    $region14: #{tpu_custom_call.1} parent=1 // pred_check
      _
    $region15: #{tpu_custom_call.1} parent=1 // pred_check_branch
      %30 = sbr.rel (0) target = $region17
    $region16: #{tpu_custom_call.1} parent=1 // pred_region
      _
    $region17: #{tpu_custom_call.1} parent=1 // pred_fallthru
      _
    // Predicated region
    $region18: #{tpu_custom_call.1} parent=1 // pred_check
      _
    $region19: #{tpu_custom_call.1} parent=1 // pred_check_branch
      %32 = sbr.rel (0) target = $region21
    $region20: #{tpu_custom_call.1} parent=1 // pred_region
      _
    $region21: #{tpu_custom_call.1} parent=1 // pred_fallthru
      _
    // Predicated region
    $region22: #{tpu_custom_call.1} parent=1 // pred_check
      _
    $region23: #{tpu_custom_call.1} parent=1 // pred_check_branch
      %34 = sbr.rel (0) target = $region25
    $region24: #{tpu_custom_call.1} parent=1 // pred_region
      _
    $region25: #{tpu_custom_call.1} parent=1 // pred_fallthru
      _
    // Predicated region
    $region26: #{tpu_custom_call.1} parent=1 // pred_check
      _
    $region27: #{tpu_custom_call.1} parent=1 // pred_check_branch
      %36 = sbr.rel (0) target = $region29
    $region28: #{tpu_custom_call.1} parent=1 // pred_region
      %37 = dma.done [#allocation3], 256
    $region29: #{tpu_custom_call.1} parent=1 // pred_fallthru
      _
    %v38 = vld [vmem:[%s0] sm:$0xff]
    %v39 = vld [vmem:[%s0 + $0x8] sm:$0xff]
    %v40 = vld [vmem:[%s1] sm:$0xff]
    %v41 = vld [vmem:[%s1 + $0x8] sm:$0xff]
    %v42 = vld [vmem:[#allocation2] sm:$0xff]
    %v43 = vld [vmem:[#allocation2 + $0x8] sm:$0xff]
    %v44 = vld [vmem:[%s3] sm:$0xff]
    %v45 = vld [vmem:[%s3 + $0x8] sm:$0xff]
    %47 = vset.pattern.permute.xlu0 0
    %48 = vperm.xlu0 %47, %v44
    %v49 = vpop.permute.xlu0 %48
    %52 = vset.pattern.permute.xlu0 0
    %53 = vperm.xlu0 %52, %v45
    %v54 = vpop.permute.xlu0 %53
    %vm56 = vcmask 261120
    %v58 = vsel %vm56, %v42, 0
    %v61 = vsel %vm56, %v43, 0
    %v64 = vsel %vm56, %v38, 0
    %v67 = vsel %vm56, %v39, 0
    %69 = vmatprep.subr.mxu0 0.0
    %v70 = vand.u32 %v64, 4294901760
    %71 = vmatpush1.xpose.msra.mxu0 %v70
    %72 = vmatprep.subr.mxu0 0.0
    %v73 = vand.u32 %v67, 4294901760
    %74 = vmatpush1.xpose.msra.mxu0 %v73
    %75 = vmatprep.subr.mxu0 0.0
    %76 = vmatpush1.xpose.msra.mxu0 0.0
    %77 = vmatprep.subr.mxu0 0.0
    %78 = vmatpush1.xpose.msra.mxu0 0.0
    %79 = vmatprep.subr.mxu0 0.0
    %80 = vmatpush1.xpose.msra.mxu0 0.0
    %81 = vmatprep.subr.mxu0 0.0
    %82 = vmatpush1.xpose.msra.mxu0 0.0
    %83 = vmatprep.subr.mxu0 0.0
    %84 = vmatpush1.xpose.msra.mxu0 0.0
    %85 = vmatprep.subr.mxu0 0.0
    %86 = vmatpush1.xpose.msra.mxu0 0.0
    %87 = vmatprep.subr.mxu0 0.0
    %88 = vmatpush1.xpose.msra.mxu0 0.0
    %89 = vmatprep.subr.mxu0 0.0
    %90 = vmatpush1.xpose.msra.mxu0 0.0
    %91 = vmatprep.subr.mxu0 0.0
    %92 = vmatpush1.xpose.msra.mxu0 0.0
    %93 = vmatprep.subr.mxu0 0.0
    %94 = vmatpush1.xpose.msra.mxu0 0.0
    %95 = vmatprep.subr.mxu0 0.0
    %96 = vmatpush1.xpose.msra.mxu0 0.0
    %97 = vmatprep.subr.mxu0 0.0
    %98 = vmatpush1.xpose.msra.mxu0 0.0
    %99 = vmatprep.subr.mxu0 0.0
    %100 = vmatpush1.xpose.msra.mxu0 0.0
    %101 = vmatprep.subr.mxu0 0.0
    %102 = vmatpush1.xpose.msra.mxu0 0.0
    %103 = vmatprep.subr.mxu0 0.0
    %104 = vmatpush1.xpose.msra.mxu0 0.0
    %105 = vmatprep.subr.mxu0 0.0
    %106 = vmatpush1.xpose.msra.mxu0 0.0
    %107 = vmatprep.subr.mxu0 0.0
    %108 = vmatpush1.xpose.msra.mxu0 0.0
    %109 = vmatprep.subr.mxu0 0.0
    %110 = vmatpush1.xpose.msra.mxu0 0.0
    %111 = vmatprep.subr.mxu0 0.0
    %112 = vmatpush1.xpose.msra.mxu0 0.0
    %113 = vmatprep.subr.mxu0 0.0
    %114 = vmatpush1.xpose.msra.mxu0 0.0
    %115 = vmatprep.subr.mxu0 0.0
    %116 = vmatpush1.xpose.msra.mxu0 0.0
    %117 = vmatprep.subr.mxu0 0.0
    %118 = vmatpush1.xpose.msra.mxu0 0.0
    %119 = vmatprep.subr.mxu0 0.0
    %120 = vmatpush1.xpose.msra.mxu0 0.0
    %121 = vmatprep.subr.mxu0 0.0
    %122 = vmatpush1.xpose.msra.mxu0 0.0
    %123 = vmatprep.subr.mxu0 0.0
    %124 = vmatpush1.xpose.msra.mxu0 0.0
    %125 = vmatprep.subr.mxu0 0.0
    %126 = vmatpush1.xpose.msra.mxu0 0.0
    %127 = vmatprep.subr.mxu0 0.0
    %128 = vmatpush1.xpose.msra.mxu0 0.0
    %129 = vmatprep.subr.mxu0 0.0
    %130 = vmatpush1.xpose.msra.mxu0 0.0
    %131 = vmatprep.subr.mxu0 0.0
    %132 = vmatpush1.xpose.msra.mxu0 0.0
    %133 = vmatprep.subr.mxu0 0.0
    %134 = vmatpush1.xpose.msra.mxu0 0.0
    %135 = vmatprep.mubr.f32.mxu0 0.0
    %v136 = vand.u32 %v58, 4294901760
    %v137 = vsub.f32 %v58, %v136
    %v138 = vand.u32 %v137, 4294901760
    %v139 = vsub.f32 %v137, %v138
    %v140 = vand.u32 %v139, 4294901760
    %141 = vmatmul.mubr.f32.gmra.mrb[0].mxu0 %v140
    %v142 = vpop.f32.mrb[0].mxu0
    %v143 = vadd.f32 %v49, %v142
    %v144 = vpop.f32.mrb[0].mxu0
    %145 = vmatprep.mubr.f32.mxu0 0.0
    %v146 = vand.u32 %v61, 4294901760
    %v147 = vsub.f32 %v61, %v146
    %v148 = vand.u32 %v147, 4294901760
    %v149 = vsub.f32 %v147, %v148
    %v150 = vand.u32 %v149, 4294901760
    %151 = vmatmul.mubr.f32.gmra.mrb[0].mxu0 %v150
    %v152 = vpop.f32.mrb[0].mxu0
    %v153 = vadd.f32 %v54, %v152
    %v154 = vpop.f32.mrb[0].mxu0
    %155 = vdwg.mxu0
    %156 = vmatprep.subr.mxu0 0.0
    %v157 = vand.u32 %v64, 4294901760
    %v158 = vsub.f32 %v64, %v157
    %v159 = vand.u32 %v158, 4294901760
    %v160 = vsub.f32 %v158, %v159
    %v161 = vand.u32 %v160, 4294901760
    %162 = vmatpush1.xpose.msra.mxu0 %v161
    %163 = vmatprep.subr.mxu0 0.0
    %v164 = vand.u32 %v67, 4294901760
    %v165 = vsub.f32 %v67, %v164
    %v166 = vand.u32 %v165, 4294901760
    %v167 = vsub.f32 %v165, %v166
    %v168 = vand.u32 %v167, 4294901760
    %169 = vmatpush1.xpose.msra.mxu0 %v168
    %170 = vmatprep.subr.mxu0 0.0
    %171 = vmatpush1.xpose.msra.mxu0 0.0
    %172 = vmatprep.subr.mxu0 0.0
    %173 = vmatpush1.xpose.msra.mxu0 0.0
    %174 = vmatprep.subr.mxu0 0.0
    %175 = vmatpush1.xpose.msra.mxu0 0.0
    %176 = vmatprep.subr.mxu0 0.0
    %177 = vmatpush1.xpose.msra.mxu0 0.0
    %178 = vmatprep.subr.mxu0 0.0
    %179 = vmatpush1.xpose.msra.mxu0 0.0
    %180 = vmatprep.subr.mxu0 0.0
    %181 = vmatpush1.xpose.msra.mxu0 0.0
    %182 = vmatprep.subr.mxu0 0.0
    %183 = vmatpush1.xpose.msra.mxu0 0.0
    %184 = vmatprep.subr.mxu0 0.0
    %185 = vmatpush1.xpose.msra.mxu0 0.0
    %186 = vmatprep.subr.mxu0 0.0
    %187 = vmatpush1.xpose.msra.mxu0 0.0
    %188 = vmatprep.subr.mxu0 0.0
    %189 = vmatpush1.xpose.msra.mxu0 0.0
    %190 = vmatprep.subr.mxu0 0.0
    %191 = vmatpush1.xpose.msra.mxu0 0.0
    %192 = vmatprep.subr.mxu0 0.0
    %193 = vmatpush1.xpose.msra.mxu0 0.0
    %194 = vmatprep.subr.mxu0 0.0
    %195 = vmatpush1.xpose.msra.mxu0 0.0
    %196 = vmatprep.subr.mxu0 0.0
    %197 = vmatpush1.xpose.msra.mxu0 0.0
    %198 = vmatprep.subr.mxu0 0.0
    %199 = vmatpush1.xpose.msra.mxu0 0.0
    %200 = vmatprep.subr.mxu0 0.0
    %201 = vmatpush1.xpose.msra.mxu0 0.0
    %202 = vmatprep.subr.mxu0 0.0
    %203 = vmatpush1.xpose.msra.mxu0 0.0
    %204 = vmatprep.subr.mxu0 0.0
    %205 = vmatpush1.xpose.msra.mxu0 0.0
    %206 = vmatprep.subr.mxu0 0.0
    %207 = vmatpush1.xpose.msra.mxu0 0.0
    %208 = vmatprep.subr.mxu0 0.0
    %209 = vmatpush1.xpose.msra.mxu0 0.0
    %210 = vmatprep.subr.mxu0 0.0
    %211 = vmatpush1.xpose.msra.mxu0 0.0
    %212 = vmatprep.subr.mxu0 0.0
    %213 = vmatpush1.xpose.msra.mxu0 0.0
    %214 = vmatprep.subr.mxu0 0.0
    %215 = vmatpush1.xpose.msra.mxu0 0.0
    %216 = vmatprep.subr.mxu0 0.0
    %217 = vmatpush1.xpose.msra.mxu0 0.0
    %218 = vmatprep.subr.mxu0 0.0
    %219 = vmatpush1.xpose.msra.mxu0 0.0
    %220 = vmatprep.subr.mxu0 0.0
    %221 = vmatpush1.xpose.msra.mxu0 0.0
    %222 = vmatprep.subr.mxu0 0.0
    %223 = vmatpush1.xpose.msra.mxu0 0.0
    %224 = vmatprep.subr.mxu0 0.0
    %225 = vmatpush1.xpose.msra.mxu0 0.0
    %226 = vmatprep.subr.mxu0 0.0
    %227 = vmatpush1.xpose.msra.mxu0 0.0
    %228 = vmatprep.subr.mxu0 0.0
    %229 = vmatpush1.xpose.msra.mxu0 0.0
    %230 = vmatprep.mubr.f32.mxu0 0.0
    %v231 = vand.u32 %v58, 4294901760
    %232 = vmatmul.mubr.f32.gmra.mrb[0].mxu0 %v231
    %v233 = vpop.f32.mrb[0].mxu0
    %v234 = vadd.f32 %v143, %v233
    %v235 = vpop.f32.mrb[0].mxu0
    %236 = vmatprep.mubr.f32.mxu0 0.0
    %v237 = vand.u32 %v61, 4294901760
    %238 = vmatmul.mubr.f32.gmra.mrb[0].mxu0 %v237
    %v239 = vpop.f32.mrb[0].mxu0
    %v240 = vadd.f32 %v153, %v239
    %v241 = vpop.f32.mrb[0].mxu0
    %242 = vdwg.mxu0
    %243 = vmatprep.subr.mxu0 0.0
    %v244 = vand.u32 %v64, 4294901760
    %v245 = vsub.f32 %v64, %v244
    %246 = vmatpush1.xpose.msra.mxu0 %v245
    %247 = vmatprep.subr.mxu0 0.0
    %v248 = vand.u32 %v67, 4294901760
    %v249 = vsub.f32 %v67, %v248
    %250 = vmatpush1.xpose.msra.mxu0 %v249
    %251 = vmatprep.subr.mxu0 0.0
    %252 = vmatpush1.xpose.msra.mxu0 0.0
    %253 = vmatprep.subr.mxu0 0.0
    %254 = vmatpush1.xpose.msra.mxu0 0.0
    %255 = vmatprep.subr.mxu0 0.0
    %256 = vmatpush1.xpose.msra.mxu0 0.0
    %257 = vmatprep.subr.mxu0 0.0
    %258 = vmatpush1.xpose.msra.mxu0 0.0
    %259 = vmatprep.subr.mxu0 0.0
    %260 = vmatpush1.xpose.msra.mxu0 0.0
    %261 = vmatprep.subr.mxu0 0.0
    %262 = vmatpush1.xpose.msra.mxu0 0.0
    %263 = vmatprep.subr.mxu0 0.0
    %264 = vmatpush1.xpose.msra.mxu0 0.0
    %265 = vmatprep.subr.mxu0 0.0
    %266 = vmatpush1.xpose.msra.mxu0 0.0
    %267 = vmatprep.subr.mxu0 0.0
    %268 = vmatpush1.xpose.msra.mxu0 0.0
    %269 = vmatprep.subr.mxu0 0.0
    %270 = vmatpush1.xpose.msra.mxu0 0.0
    %271 = vmatprep.subr.mxu0 0.0
    %272 = vmatpush1.xpose.msra.mxu0 0.0
    %273 = vmatprep.subr.mxu0 0.0
    %274 = vmatpush1.xpose.msra.mxu0 0.0
    %275 = vmatprep.subr.mxu0 0.0
    %276 = vmatpush1.xpose.msra.mxu0 0.0
    %277 = vmatprep.subr.mxu0 0.0
    %278 = vmatpush1.xpose.msra.mxu0 0.0
    %279 = vmatprep.subr.mxu0 0.0
    %280 = vmatpush1.xpose.msra.mxu0 0.0
    %281 = vmatprep.subr.mxu0 0.0
    %282 = vmatpush1.xpose.msra.mxu0 0.0
    %283 = vmatprep.subr.mxu0 0.0
    %284 = vmatpush1.xpose.msra.mxu0 0.0
    %285 = vmatprep.subr.mxu0 0.0
    %286 = vmatpush1.xpose.msra.mxu0 0.0
    %287 = vmatprep.subr.mxu0 0.0
    %288 = vmatpush1.xpose.msra.mxu0 0.0
    %289 = vmatprep.subr.mxu0 0.0
    %290 = vmatpush1.xpose.msra.mxu0 0.0
    %291 = vmatprep.subr.mxu0 0.0
    %292 = vmatpush1.xpose.msra.mxu0 0.0
    %293 = vmatprep.subr.mxu0 0.0
    %294 = vmatpush1.xpose.msra.mxu0 0.0
    %295 = vmatprep.subr.mxu0 0.0
    %296 = vmatpush1.xpose.msra.mxu0 0.0
    %297 = vmatprep.subr.mxu0 0.0
    %298 = vmatpush1.xpose.msra.mxu0 0.0
    %299 = vmatprep.subr.mxu0 0.0
    %300 = vmatpush1.xpose.msra.mxu0 0.0
    %301 = vmatprep.subr.mxu0 0.0
    %302 = vmatpush1.xpose.msra.mxu0 0.0
    %303 = vmatprep.subr.mxu0 0.0
    %304 = vmatpush1.xpose.msra.mxu0 0.0
    %305 = vmatprep.subr.mxu0 0.0
    %306 = vmatpush1.xpose.msra.mxu0 0.0
    %307 = vmatprep.subr.mxu0 0.0
    %308 = vmatpush1.xpose.msra.mxu0 0.0
    %309 = vmatprep.subr.mxu0 0.0
    %310 = vmatpush1.xpose.msra.mxu0 0.0
    %311 = vmatprep.mubr.f32.mxu0 0.0
    %v312 = vand.u32 %v58, 4294901760
    %v313 = vsub.f32 %v58, %v312
    %314 = vmatmul.mubr.f32.gmra.mrb[0].mxu0 %v313
    %v315 = vpop.f32.mrb[0].mxu0
    %v316 = vadd.f32 %v234, %v315
    %v317 = vpop.f32.mrb[0].mxu0
    %318 = vmatprep.mubr.f32.mxu0 0.0
    %v319 = vand.u32 %v61, 4294901760
    %v320 = vsub.f32 %v61, %v319
    %321 = vmatmul.mubr.f32.gmra.mrb[0].mxu0 %v320
    %v322 = vpop.f32.mrb[0].mxu0
    %v323 = vadd.f32 %v240, %v322
    %v324 = vpop.f32.mrb[0].mxu0
    %325 = vdwg.mxu0
    %326 = vmatprep.subr.mxu0 0.0
    %v327 = vand.u32 %v64, 4294901760
    %328 = vmatpush1.xpose.msra.mxu0 %v327
    %329 = vmatprep.subr.mxu0 0.0
    %v330 = vand.u32 %v67, 4294901760
    %331 = vmatpush1.xpose.msra.mxu0 %v330
    %332 = vmatprep.subr.mxu0 0.0
    %333 = vmatpush1.xpose.msra.mxu0 0.0
    %334 = vmatprep.subr.mxu0 0.0
    %335 = vmatpush1.xpose.msra.mxu0 0.0
    %336 = vmatprep.subr.mxu0 0.0
    %337 = vmatpush1.xpose.msra.mxu0 0.0
    %338 = vmatprep.subr.mxu0 0.0
    %339 = vmatpush1.xpose.msra.mxu0 0.0
    %340 = vmatprep.subr.mxu0 0.0
    %341 = vmatpush1.xpose.msra.mxu0 0.0
    %342 = vmatprep.subr.mxu0 0.0
    %343 = vmatpush1.xpose.msra.mxu0 0.0
    %344 = vmatprep.subr.mxu0 0.0
    %345 = vmatpush1.xpose.msra.mxu0 0.0
    %346 = vmatprep.subr.mxu0 0.0
    %347 = vmatpush1.xpose.msra.mxu0 0.0
    %348 = vmatprep.subr.mxu0 0.0
    %349 = vmatpush1.xpose.msra.mxu0 0.0
    %350 = vmatprep.subr.mxu0 0.0
    %351 = vmatpush1.xpose.msra.mxu0 0.0
    %352 = vmatprep.subr.mxu0 0.0
    %353 = vmatpush1.xpose.msra.mxu0 0.0
    %354 = vmatprep.subr.mxu0 0.0
    %355 = vmatpush1.xpose.msra.mxu0 0.0
    %356 = vmatprep.subr.mxu0 0.0
    %357 = vmatpush1.xpose.msra.mxu0 0.0
    %358 = vmatprep.subr.mxu0 0.0
    %359 = vmatpush1.xpose.msra.mxu0 0.0
    %360 = vmatprep.subr.mxu0 0.0
    %361 = vmatpush1.xpose.msra.mxu0 0.0
    %362 = vmatprep.subr.mxu0 0.0
    %363 = vmatpush1.xpose.msra.mxu0 0.0
    %364 = vmatprep.subr.mxu0 0.0
    %365 = vmatpush1.xpose.msra.mxu0 0.0
    %366 = vmatprep.subr.mxu0 0.0
    %367 = vmatpush1.xpose.msra.mxu0 0.0
    %368 = vmatprep.subr.mxu0 0.0
    %369 = vmatpush1.xpose.msra.mxu0 0.0
    %370 = vmatprep.subr.mxu0 0.0
    %371 = vmatpush1.xpose.msra.mxu0 0.0
    %372 = vmatprep.subr.mxu0 0.0
    %373 = vmatpush1.xpose.msra.mxu0 0.0
    %374 = vmatprep.subr.mxu0 0.0
    %375 = vmatpush1.xpose.msra.mxu0 0.0
    %376 = vmatprep.subr.mxu0 0.0
    %377 = vmatpush1.xpose.msra.mxu0 0.0
    %378 = vmatprep.subr.mxu0 0.0
    %379 = vmatpush1.xpose.msra.mxu0 0.0
    %380 = vmatprep.subr.mxu0 0.0
    %381 = vmatpush1.xpose.msra.mxu0 0.0
    %382 = vmatprep.subr.mxu0 0.0
    %383 = vmatpush1.xpose.msra.mxu0 0.0
    %384 = vmatprep.subr.mxu0 0.0
    %385 = vmatpush1.xpose.msra.mxu0 0.0
    %386 = vmatprep.subr.mxu0 0.0
    %387 = vmatpush1.xpose.msra.mxu0 0.0
    %388 = vmatprep.subr.mxu0 0.0
    %389 = vmatpush1.xpose.msra.mxu0 0.0
    %390 = vmatprep.subr.mxu0 0.0
    %391 = vmatpush1.xpose.msra.mxu0 0.0
    %392 = vmatprep.mubr.f32.mxu0 0.0
    %v393 = vand.u32 %v58, 4294901760
    %v394 = vsub.f32 %v58, %v393
    %v395 = vand.u32 %v394, 4294901760
    %396 = vmatmul.mubr.f32.gmra.mrb[0].mxu0 %v395
    %v397 = vpop.f32.mrb[0].mxu0
    %v398 = vadd.f32 %v316, %v397
    %v399 = vpop.f32.mrb[0].mxu0
    %400 = vmatprep.mubr.f32.mxu0 0.0
    %v401 = vand.u32 %v61, 4294901760
    %v402 = vsub.f32 %v61, %v401
    %v403 = vand.u32 %v402, 4294901760
    %404 = vmatmul.mubr.f32.gmra.mrb[0].mxu0 %v403
    %v405 = vpop.f32.mrb[0].mxu0
    %v406 = vadd.f32 %v323, %v405
    %v407 = vpop.f32.mrb[0].mxu0
    %408 = vdwg.mxu0
    %409 = vmatprep.subr.mxu0 0.0
    %v410 = vand.u32 %v64, 4294901760
    %v411 = vsub.f32 %v64, %v410
    %v412 = vand.u32 %v411, 4294901760
    %413 = vmatpush1.xpose.msra.mxu0 %v412
    %414 = vmatprep.subr.mxu0 0.0
    %v415 = vand.u32 %v67, 4294901760
    %v416 = vsub.f32 %v67, %v415
    %v417 = vand.u32 %v416, 4294901760
    %418 = vmatpush1.xpose.msra.mxu0 %v417
    %419 = vmatprep.subr.mxu0 0.0
    %420 = vmatpush1.xpose.msra.mxu0 0.0
    %421 = vmatprep.subr.mxu0 0.0
    %422 = vmatpush1.xpose.msra.mxu0 0.0
    %423 = vmatprep.subr.mxu0 0.0
    %424 = vmatpush1.xpose.msra.mxu0 0.0
    %425 = vmatprep.subr.mxu0 0.0
    %426 = vmatpush1.xpose.msra.mxu0 0.0
    %427 = vmatprep.subr.mxu0 0.0
    %428 = vmatpush1.xpose.msra.mxu0 0.0
    %429 = vmatprep.subr.mxu0 0.0
    %430 = vmatpush1.xpose.msra.mxu0 0.0
    %431 = vmatprep.subr.mxu0 0.0
    %432 = vmatpush1.xpose.msra.mxu0 0.0
    %433 = vmatprep.subr.mxu0 0.0
    %434 = vmatpush1.xpose.msra.mxu0 0.0
    %435 = vmatprep.subr.mxu0 0.0
    %436 = vmatpush1.xpose.msra.mxu0 0.0
    %437 = vmatprep.subr.mxu0 0.0
    %438 = vmatpush1.xpose.msra.mxu0 0.0
    %439 = vmatprep.subr.mxu0 0.0
    %440 = vmatpush1.xpose.msra.mxu0 0.0
    %441 = vmatprep.subr.mxu0 0.0
    %442 = vmatpush1.xpose.msra.mxu0 0.0
    %443 = vmatprep.subr.mxu0 0.0
    %444 = vmatpush1.xpose.msra.mxu0 0.0
    %445 = vmatprep.subr.mxu0 0.0
    %446 = vmatpush1.xpose.msra.mxu0 0.0
    %447 = vmatprep.subr.mxu0 0.0
    %448 = vmatpush1.xpose.msra.mxu0 0.0
    %449 = vmatprep.subr.mxu0 0.0
    %450 = vmatpush1.xpose.msra.mxu0 0.0
    %451 = vmatprep.subr.mxu0 0.0
    %452 = vmatpush1.xpose.msra.mxu0 0.0
    %453 = vmatprep.subr.mxu0 0.0
    %454 = vmatpush1.xpose.msra.mxu0 0.0
    %455 = vmatprep.subr.mxu0 0.0
    %456 = vmatpush1.xpose.msra.mxu0 0.0
    %457 = vmatprep.subr.mxu0 0.0
    %458 = vmatpush1.xpose.msra.mxu0 0.0
    %459 = vmatprep.subr.mxu0 0.0
    %460 = vmatpush1.xpose.msra.mxu0 0.0
    %461 = vmatprep.subr.mxu0 0.0
    %462 = vmatpush1.xpose.msra.mxu0 0.0
    %463 = vmatprep.subr.mxu0 0.0
    %464 = vmatpush1.xpose.msra.mxu0 0.0
    %465 = vmatprep.subr.mxu0 0.0
    %466 = vmatpush1.xpose.msra.mxu0 0.0
    %467 = vmatprep.subr.mxu0 0.0
    %468 = vmatpush1.xpose.msra.mxu0 0.0
    %469 = vmatprep.subr.mxu0 0.0
    %470 = vmatpush1.xpose.msra.mxu0 0.0
    %471 = vmatprep.subr.mxu0 0.0
    %472 = vmatpush1.xpose.msra.mxu0 0.0
    %473 = vmatprep.subr.mxu0 0.0
    %474 = vmatpush1.xpose.msra.mxu0 0.0
    %475 = vmatprep.subr.mxu0 0.0
    %476 = vmatpush1.xpose.msra.mxu0 0.0
    %477 = vmatprep.subr.mxu0 0.0
    %478 = vmatpush1.xpose.msra.mxu0 0.0
    %479 = vmatprep.mubr.f32.mxu0 0.0
    %v480 = vand.u32 %v58, 4294901760
    %481 = vmatmul.mubr.f32.gmra.mrb[0].mxu0 %v480
    %v482 = vpop.f32.mrb[0].mxu0
    %v483 = vadd.f32 %v398, %v482
    %v484 = vpop.f32.mrb[0].mxu0
    %485 = vmatprep.mubr.f32.mxu0 0.0
    %v486 = vand.u32 %v61, 4294901760
    %487 = vmatmul.mubr.f32.gmra.mrb[0].mxu0 %v486
    %v488 = vpop.f32.mrb[0].mxu0
    %v489 = vadd.f32 %v406, %v488
    %v490 = vpop.f32.mrb[0].mxu0
    %491 = vdwg.mxu0
    %492 = vmatprep.subr.mxu0 0.0
    %v493 = vand.u32 %v64, 4294901760
    %494 = vmatpush1.xpose.msra.mxu0 %v493
    %495 = vmatprep.subr.mxu0 0.0
    %v496 = vand.u32 %v67, 4294901760
    %497 = vmatpush1.xpose.msra.mxu0 %v496
    %498 = vmatprep.subr.mxu0 0.0
    %499 = vmatpush1.xpose.msra.mxu0 0.0
    %500 = vmatprep.subr.mxu0 0.0
    %501 = vmatpush1.xpose.msra.mxu0 0.0
    %502 = vmatprep.subr.mxu0 0.0
    %503 = vmatpush1.xpose.msra.mxu0 0.0
    %504 = vmatprep.subr.mxu0 0.0
    %505 = vmatpush1.xpose.msra.mxu0 0.0
    %506 = vmatprep.subr.mxu0 0.0
    %507 = vmatpush1.xpose.msra.mxu0 0.0
    %508 = vmatprep.subr.mxu0 0.0
    %509 = vmatpush1.xpose.msra.mxu0 0.0
    %510 = vmatprep.subr.mxu0 0.0
    %511 = vmatpush1.xpose.msra.mxu0 0.0
    %512 = vmatprep.subr.mxu0 0.0
    %513 = vmatpush1.xpose.msra.mxu0 0.0
    %514 = vmatprep.subr.mxu0 0.0
    %515 = vmatpush1.xpose.msra.mxu0 0.0
    %516 = vmatprep.subr.mxu0 0.0
    %517 = vmatpush1.xpose.msra.mxu0 0.0
    %518 = vmatprep.subr.mxu0 0.0
    %519 = vmatpush1.xpose.msra.mxu0 0.0
    %520 = vmatprep.subr.mxu0 0.0
    %521 = vmatpush1.xpose.msra.mxu0 0.0
    %522 = vmatprep.subr.mxu0 0.0
    %523 = vmatpush1.xpose.msra.mxu0 0.0
    %524 = vmatprep.subr.mxu0 0.0
    %525 = vmatpush1.xpose.msra.mxu0 0.0
    %526 = vmatprep.subr.mxu0 0.0
    %527 = vmatpush1.xpose.msra.mxu0 0.0
    %528 = vmatprep.subr.mxu0 0.0
    %529 = vmatpush1.xpose.msra.mxu0 0.0
    %530 = vmatprep.subr.mxu0 0.0
    %531 = vmatpush1.xpose.msra.mxu0 0.0
    %532 = vmatprep.subr.mxu0 0.0
    %533 = vmatpush1.xpose.msra.mxu0 0.0
    %534 = vmatprep.subr.mxu0 0.0
    %535 = vmatpush1.xpose.msra.mxu0 0.0
    %536 = vmatprep.subr.mxu0 0.0
    %537 = vmatpush1.xpose.msra.mxu0 0.0
    %538 = vmatprep.subr.mxu0 0.0
    %539 = vmatpush1.xpose.msra.mxu0 0.0
    %540 = vmatprep.subr.mxu0 0.0
    %541 = vmatpush1.xpose.msra.mxu0 0.0
    %542 = vmatprep.subr.mxu0 0.0
    %543 = vmatpush1.xpose.msra.mxu0 0.0
    %544 = vmatprep.subr.mxu0 0.0
    %545 = vmatpush1.xpose.msra.mxu0 0.0
    %546 = vmatprep.subr.mxu0 0.0
    %547 = vmatpush1.xpose.msra.mxu0 0.0
    %548 = vmatprep.subr.mxu0 0.0
    %549 = vmatpush1.xpose.msra.mxu0 0.0
    %550 = vmatprep.subr.mxu0 0.0
    %551 = vmatpush1.xpose.msra.mxu0 0.0
    %552 = vmatprep.subr.mxu0 0.0
    %553 = vmatpush1.xpose.msra.mxu0 0.0
    %554 = vmatprep.subr.mxu0 0.0
    %555 = vmatpush1.xpose.msra.mxu0 0.0
    %556 = vmatprep.subr.mxu0 0.0
    %557 = vmatpush1.xpose.msra.mxu0 0.0
    %558 = vmatprep.mubr.f32.mxu0 0.0
    %v559 = vand.u32 %v58, 4294901760
    %560 = vmatmul.mubr.f32.gmra.mrb[0].mxu0 %v559
    %v561 = vpop.f32.mrb[0].mxu0
    %v562 = vadd.f32 %v483, %v561
    %v563 = vpop.f32.mrb[0].mxu0
    %564 = vmatprep.mubr.f32.mxu0 0.0
    %v565 = vand.u32 %v61, 4294901760
    %566 = vmatmul.mubr.f32.gmra.mrb[0].mxu0 %v565
    %v567 = vpop.f32.mrb[0].mxu0
    %v568 = vadd.f32 %v489, %v567
    %v569 = vpop.f32.mrb[0].mxu0
    %570 = vdwg.mxu0
    %v571 = vld [vmem:[%s4] sm:$0xff]
    %v572 = vld [vmem:[%s4 + $0x8] sm:$0xff]
    %v573 = vld [vmem:[%s5] sm:$0xff]
    %v574 = vld [vmem:[%s5 + $0x8] sm:$0xff]
    %576 = vset.pattern.permute.xlu0 0
    %577 = vperm.xlu0 %576, %v573
    %v578 = vpop.permute.xlu0 %577
    %581 = vset.pattern.permute.xlu0 0
    %582 = vperm.xlu0 %581, %v574
    %v583 = vpop.permute.xlu0 %582
    %vm585 = vcmask 130048
    %v587 = vsel %vm585, %v571, 0
    %v590 = vsel %vm585, %v572, 0
    %v593 = vsel %vm585, %v40, 0
    %v596 = vsel %vm585, %v41, 0
    %598 = vmatprep.subr.mxu0 0.0
    %v599 = vand.u32 %v593, 4294901760
    %600 = vmatpush1.xpose.msra.mxu0 %v599
    %601 = vmatprep.subr.mxu0 0.0
    %v602 = vand.u32 %v596, 4294901760
    %603 = vmatpush1.xpose.msra.mxu0 %v602
    %604 = vmatprep.subr.mxu0 0.0
    %605 = vmatpush1.xpose.msra.mxu0 0.0
    %606 = vmatprep.subr.mxu0 0.0
    %607 = vmatpush1.xpose.msra.mxu0 0.0
    %608 = vmatprep.subr.mxu0 0.0
    %609 = vmatpush1.xpose.msra.mxu0 0.0
    %610 = vmatprep.subr.mxu0 0.0
    %611 = vmatpush1.xpose.msra.mxu0 0.0
    %612 = vmatprep.subr.mxu0 0.0
    %613 = vmatpush1.xpose.msra.mxu0 0.0
    %614 = vmatprep.subr.mxu0 0.0
    %615 = vmatpush1.xpose.msra.mxu0 0.0
    %616 = vmatprep.subr.mxu0 0.0
    %617 = vmatpush1.xpose.msra.mxu0 0.0
    %618 = vmatprep.subr.mxu0 0.0
    %619 = vmatpush1.xpose.msra.mxu0 0.0
    %620 = vmatprep.subr.mxu0 0.0
    %621 = vmatpush1.xpose.msra.mxu0 0.0
    %622 = vmatprep.subr.mxu0 0.0
    %623 = vmatpush1.xpose.msra.mxu0 0.0
    %624 = vmatprep.subr.mxu0 0.0
    %625 = vmatpush1.xpose.msra.mxu0 0.0
    %626 = vmatprep.subr.mxu0 0.0
    %627 = vmatpush1.xpose.msra.mxu0 0.0
    %628 = vmatprep.subr.mxu0 0.0
    %629 = vmatpush1.xpose.msra.mxu0 0.0
    %630 = vmatprep.subr.mxu0 0.0
    %631 = vmatpush1.xpose.msra.mxu0 0.0
    %632 = vmatprep.subr.mxu0 0.0
    %633 = vmatpush1.xpose.msra.mxu0 0.0
    %634 = vmatprep.subr.mxu0 0.0
    %635 = vmatpush1.xpose.msra.mxu0 0.0
    %636 = vmatprep.subr.mxu0 0.0
    %637 = vmatpush1.xpose.msra.mxu0 0.0
    %638 = vmatprep.subr.mxu0 0.0
    %639 = vmatpush1.xpose.msra.mxu0 0.0
    %640 = vmatprep.subr.mxu0 0.0
    %641 = vmatpush1.xpose.msra.mxu0 0.0
    %642 = vmatprep.subr.mxu0 0.0
    %643 = vmatpush1.xpose.msra.mxu0 0.0
    %644 = vmatprep.subr.mxu0 0.0
    %645 = vmatpush1.xpose.msra.mxu0 0.0
    %646 = vmatprep.subr.mxu0 0.0
    %647 = vmatpush1.xpose.msra.mxu0 0.0
    %648 = vmatprep.subr.mxu0 0.0
    %649 = vmatpush1.xpose.msra.mxu0 0.0
    %650 = vmatprep.subr.mxu0 0.0
    %651 = vmatpush1.xpose.msra.mxu0 0.0
    %652 = vmatprep.subr.mxu0 0.0
    %653 = vmatpush1.xpose.msra.mxu0 0.0
    %654 = vmatprep.subr.mxu0 0.0
    %655 = vmatpush1.xpose.msra.mxu0 0.0
    %656 = vmatprep.subr.mxu0 0.0
    %657 = vmatpush1.xpose.msra.mxu0 0.0
    %658 = vmatprep.subr.mxu0 0.0
    %659 = vmatpush1.xpose.msra.mxu0 0.0
    %660 = vmatprep.subr.mxu0 0.0
    %661 = vmatpush1.xpose.msra.mxu0 0.0
    %662 = vmatprep.subr.mxu0 0.0
    %663 = vmatpush1.xpose.msra.mxu0 0.0
    %664 = vmatprep.mubr.f32.mxu0 0.0
    %v665 = vand.u32 %v587, 4294901760
    %v666 = vsub.f32 %v587, %v665
    %v667 = vand.u32 %v666, 4294901760
    %v668 = vsub.f32 %v666, %v667
    %v669 = vand.u32 %v668, 4294901760
    %670 = vmatmul.mubr.f32.gmra.mrb[0].mxu0 %v669
    %v671 = vpop.f32.mrb[0].mxu0
    %v672 = vadd.f32 %v578, %v671
    %v673 = vpop.f32.mrb[0].mxu0
    %674 = vmatprep.mubr.f32.mxu0 0.0
    %v675 = vand.u32 %v590, 4294901760
    %v676 = vsub.f32 %v590, %v675
    %v677 = vand.u32 %v676, 4294901760
    %v678 = vsub.f32 %v676, %v677
    %v679 = vand.u32 %v678, 4294901760
    %680 = vmatmul.mubr.f32.gmra.mrb[0].mxu0 %v679
    %v681 = vpop.f32.mrb[0].mxu0
    %v682 = vadd.f32 %v583, %v681
    %v683 = vpop.f32.mrb[0].mxu0
    %684 = vdwg.mxu0
    %685 = vmatprep.subr.mxu0 0.0
    %v686 = vand.u32 %v593, 4294901760
    %v687 = vsub.f32 %v593, %v686
    %v688 = vand.u32 %v687, 4294901760
    %v689 = vsub.f32 %v687, %v688
    %v690 = vand.u32 %v689, 4294901760
    %691 = vmatpush1.xpose.msra.mxu0 %v690
    %692 = vmatprep.subr.mxu0 0.0
    %v693 = vand.u32 %v596, 4294901760
    %v694 = vsub.f32 %v596, %v693
    %v695 = vand.u32 %v694, 4294901760
    %v696 = vsub.f32 %v694, %v695
    %v697 = vand.u32 %v696, 4294901760
    %698 = vmatpush1.xpose.msra.mxu0 %v697
    %699 = vmatprep.subr.mxu0 0.0
    %700 = vmatpush1.xpose.msra.mxu0 0.0
    %701 = vmatprep.subr.mxu0 0.0
    %702 = vmatpush1.xpose.msra.mxu0 0.0
    %703 = vmatprep.subr.mxu0 0.0
    %704 = vmatpush1.xpose.msra.mxu0 0.0
    %705 = vmatprep.subr.mxu0 0.0
    %706 = vmatpush1.xpose.msra.mxu0 0.0
    %707 = vmatprep.subr.mxu0 0.0
    %708 = vmatpush1.xpose.msra.mxu0 0.0
    %709 = vmatprep.subr.mxu0 0.0
    %710 = vmatpush1.xpose.msra.mxu0 0.0
    %711 = vmatprep.subr.mxu0 0.0
    %712 = vmatpush1.xpose.msra.mxu0 0.0
    %713 = vmatprep.subr.mxu0 0.0
    %714 = vmatpush1.xpose.msra.mxu0 0.0
    %715 = vmatprep.subr.mxu0 0.0
    %716 = vmatpush1.xpose.msra.mxu0 0.0
    %717 = vmatprep.subr.mxu0 0.0
    %718 = vmatpush1.xpose.msra.mxu0 0.0
    %719 = vmatprep.subr.mxu0 0.0
    %720 = vmatpush1.xpose.msra.mxu0 0.0
    %721 = vmatprep.subr.mxu0 0.0
    %722 = vmatpush1.xpose.msra.mxu0 0.0
    %723 = vmatprep.subr.mxu0 0.0
    %724 = vmatpush1.xpose.msra.mxu0 0.0
    %725 = vmatprep.subr.mxu0 0.0
    %726 = vmatpush1.xpose.msra.mxu0 0.0
    %727 = vmatprep.subr.mxu0 0.0
    %728 = vmatpush1.xpose.msra.mxu0 0.0
    %729 = vmatprep.subr.mxu0 0.0
    %730 = vmatpush1.xpose.msra.mxu0 0.0
    %731 = vmatprep.subr.mxu0 0.0
    %732 = vmatpush1.xpose.msra.mxu0 0.0
    %733 = vmatprep.subr.mxu0 0.0
    %734 = vmatpush1.xpose.msra.mxu0 0.0
    %735 = vmatprep.subr.mxu0 0.0
    %736 = vmatpush1.xpose.msra.mxu0 0.0
    %737 = vmatprep.subr.mxu0 0.0
    %738 = vmatpush1.xpose.msra.mxu0 0.0
    %739 = vmatprep.subr.mxu0 0.0
    %740 = vmatpush1.xpose.msra.mxu0 0.0
    %741 = vmatprep.subr.mxu0 0.0
    %742 = vmatpush1.xpose.msra.mxu0 0.0
    %743 = vmatprep.subr.mxu0 0.0
    %744 = vmatpush1.xpose.msra.mxu0 0.0
    %745 = vmatprep.subr.mxu0 0.0
    %746 = vmatpush1.xpose.msra.mxu0 0.0
    %747 = vmatprep.subr.mxu0 0.0
    %748 = vmatpush1.xpose.msra.mxu0 0.0
    %749 = vmatprep.subr.mxu0 0.0
    %750 = vmatpush1.xpose.msra.mxu0 0.0
    %751 = vmatprep.subr.mxu0 0.0
    %752 = vmatpush1.xpose.msra.mxu0 0.0
    %753 = vmatprep.subr.mxu0 0.0
    %754 = vmatpush1.xpose.msra.mxu0 0.0
    %755 = vmatprep.subr.mxu0 0.0
    %756 = vmatpush1.xpose.msra.mxu0 0.0
    %757 = vmatprep.subr.mxu0 0.0
    %758 = vmatpush1.xpose.msra.mxu0 0.0
    %759 = vmatprep.mubr.f32.mxu0 0.0
    %v760 = vand.u32 %v587, 4294901760
    %761 = vmatmul.mubr.f32.gmra.mrb[0].mxu0 %v760
    %v762 = vpop.f32.mrb[0].mxu0
    %v763 = vadd.f32 %v672, %v762
    %v764 = vpop.f32.mrb[0].mxu0
    %765 = vmatprep.mubr.f32.mxu0 0.0
    %v766 = vand.u32 %v590, 4294901760
    %767 = vmatmul.mubr.f32.gmra.mrb[0].mxu0 %v766
    %v768 = vpop.f32.mrb[0].mxu0
    %v769 = vadd.f32 %v682, %v768
    %v770 = vpop.f32.mrb[0].mxu0
    %771 = vdwg.mxu0
    %772 = vmatprep.subr.mxu0 0.0
    %v773 = vand.u32 %v593, 4294901760
    %v774 = vsub.f32 %v593, %v773
    %775 = vmatpush1.xpose.msra.mxu0 %v774
    %776 = vmatprep.subr.mxu0 0.0
    %v777 = vand.u32 %v596, 4294901760
    %v778 = vsub.f32 %v596, %v777
    %779 = vmatpush1.xpose.msra.mxu0 %v778
    %780 = vmatprep.subr.mxu0 0.0
    %781 = vmatpush1.xpose.msra.mxu0 0.0
    %782 = vmatprep.subr.mxu0 0.0
    %783 = vmatpush1.xpose.msra.mxu0 0.0
    %784 = vmatprep.subr.mxu0 0.0
    %785 = vmatpush1.xpose.msra.mxu0 0.0
    %786 = vmatprep.subr.mxu0 0.0
    %787 = vmatpush1.xpose.msra.mxu0 0.0
    %788 = vmatprep.subr.mxu0 0.0
    %789 = vmatpush1.xpose.msra.mxu0 0.0
    %790 = vmatprep.subr.mxu0 0.0
    %791 = vmatpush1.xpose.msra.mxu0 0.0
    %792 = vmatprep.subr.mxu0 0.0
    %793 = vmatpush1.xpose.msra.mxu0 0.0
    %794 = vmatprep.subr.mxu0 0.0
    %795 = vmatpush1.xpose.msra.mxu0 0.0
    %796 = vmatprep.subr.mxu0 0.0
    %797 = vmatpush1.xpose.msra.mxu0 0.0
    %798 = vmatprep.subr.mxu0 0.0
    %799 = vmatpush1.xpose.msra.mxu0 0.0
    %800 = vmatprep.subr.mxu0 0.0
    %801 = vmatpush1.xpose.msra.mxu0 0.0
    %802 = vmatprep.subr.mxu0 0.0
    %803 = vmatpush1.xpose.msra.mxu0 0.0
    %804 = vmatprep.subr.mxu0 0.0
    %805 = vmatpush1.xpose.msra.mxu0 0.0
    %806 = vmatprep.subr.mxu0 0.0
    %807 = vmatpush1.xpose.msra.mxu0 0.0
    %808 = vmatprep.subr.mxu0 0.0
    %809 = vmatpush1.xpose.msra.mxu0 0.0
    %810 = vmatprep.subr.mxu0 0.0
    %811 = vmatpush1.xpose.msra.mxu0 0.0
    %812 = vmatprep.subr.mxu0 0.0
    %813 = vmatpush1.xpose.msra.mxu0 0.0
    %814 = vmatprep.subr.mxu0 0.0
    %815 = vmatpush1.xpose.msra.mxu0 0.0
    %816 = vmatprep.subr.mxu0 0.0
    %817 = vmatpush1.xpose.msra.mxu0 0.0
    %818 = vmatprep.subr.mxu0 0.0
    %819 = vmatpush1.xpose.msra.mxu0 0.0
    %820 = vmatprep.subr.mxu0 0.0
    %821 = vmatpush1.xpose.msra.mxu0 0.0
    %822 = vmatprep.subr.mxu0 0.0
    %823 = vmatpush1.xpose.msra.mxu0 0.0
    %824 = vmatprep.subr.mxu0 0.0
    %825 = vmatpush1.xpose.msra.mxu0 0.0
    %826 = vmatprep.subr.mxu0 0.0
    %827 = vmatpush1.xpose.msra.mxu0 0.0
    %828 = vmatprep.subr.mxu0 0.0
    %829 = vmatpush1.xpose.msra.mxu0 0.0
    %830 = vmatprep.subr.mxu0 0.0
    %831 = vmatpush1.xpose.msra.mxu0 0.0
    %832 = vmatprep.subr.mxu0 0.0
    %833 = vmatpush1.xpose.msra.mxu0 0.0
    %834 = vmatprep.subr.mxu0 0.0
    %835 = vmatpush1.xpose.msra.mxu0 0.0
    %836 = vmatprep.subr.mxu0 0.0
    %837 = vmatpush1.xpose.msra.mxu0 0.0
    %838 = vmatprep.subr.mxu0 0.0
    %839 = vmatpush1.xpose.msra.mxu0 0.0
    %840 = vmatprep.mubr.f32.mxu0 0.0
    %v841 = vand.u32 %v587, 4294901760
    %v842 = vsub.f32 %v587, %v841
    %843 = vmatmul.mubr.f32.gmra.mrb[0].mxu0 %v842
    %v844 = vpop.f32.mrb[0].mxu0
    %v845 = vadd.f32 %v763, %v844
    %v846 = vpop.f32.mrb[0].mxu0
    %847 = vmatprep.mubr.f32.mxu0 0.0
    %v848 = vand.u32 %v590, 4294901760
    %v849 = vsub.f32 %v590, %v848
    %850 = vmatmul.mubr.f32.gmra.mrb[0].mxu0 %v849
    %v851 = vpop.f32.mrb[0].mxu0
    %v852 = vadd.f32 %v769, %v851
    %v853 = vpop.f32.mrb[0].mxu0
    %854 = vdwg.mxu0
    %855 = vmatprep.subr.mxu0 0.0
    %v856 = vand.u32 %v593, 4294901760
    %857 = vmatpush1.xpose.msra.mxu0 %v856
    %858 = vmatprep.subr.mxu0 0.0
    %v859 = vand.u32 %v596, 4294901760
    %860 = vmatpush1.xpose.msra.mxu0 %v859
    %861 = vmatprep.subr.mxu0 0.0
    %862 = vmatpush1.xpose.msra.mxu0 0.0
    %863 = vmatprep.subr.mxu0 0.0
    %864 = vmatpush1.xpose.msra.mxu0 0.0
    %865 = vmatprep.subr.mxu0 0.0
    %866 = vmatpush1.xpose.msra.mxu0 0.0
    %867 = vmatprep.subr.mxu0 0.0
    %868 = vmatpush1.xpose.msra.mxu0 0.0
    %869 = vmatprep.subr.mxu0 0.0
    %870 = vmatpush1.xpose.msra.mxu0 0.0
    %871 = vmatprep.subr.mxu0 0.0
    %872 = vmatpush1.xpose.msra.mxu0 0.0
    %873 = vmatprep.subr.mxu0 0.0
    %874 = vmatpush1.xpose.msra.mxu0 0.0
    %875 = vmatprep.subr.mxu0 0.0
    %876 = vmatpush1.xpose.msra.mxu0 0.0
    %877 = vmatprep.subr.mxu0 0.0
    %878 = vmatpush1.xpose.msra.mxu0 0.0
    %879 = vmatprep.subr.mxu0 0.0
    %880 = vmatpush1.xpose.msra.mxu0 0.0
    %881 = vmatprep.subr.mxu0 0.0
    %882 = vmatpush1.xpose.msra.mxu0 0.0
    %883 = vmatprep.subr.mxu0 0.0
    %884 = vmatpush1.xpose.msra.mxu0 0.0
    %885 = vmatprep.subr.mxu0 0.0
    %886 = vmatpush1.xpose.msra.mxu0 0.0
    %887 = vmatprep.subr.mxu0 0.0
    %888 = vmatpush1.xpose.msra.mxu0 0.0
    %889 = vmatprep.subr.mxu0 0.0
    %890 = vmatpush1.xpose.msra.mxu0 0.0
    %891 = vmatprep.subr.mxu0 0.0
    %892 = vmatpush1.xpose.msra.mxu0 0.0
    %893 = vmatprep.subr.mxu0 0.0
    %894 = vmatpush1.xpose.msra.mxu0 0.0
    %895 = vmatprep.subr.mxu0 0.0
    %896 = vmatpush1.xpose.msra.mxu0 0.0
    %897 = vmatprep.subr.mxu0 0.0
    %898 = vmatpush1.xpose.msra.mxu0 0.0
    %899 = vmatprep.subr.mxu0 0.0
    %900 = vmatpush1.xpose.msra.mxu0 0.0
    %901 = vmatprep.subr.mxu0 0.0
    %902 = vmatpush1.xpose.msra.mxu0 0.0
    %903 = vmatprep.subr.mxu0 0.0
    %904 = vmatpush1.xpose.msra.mxu0 0.0
    %905 = vmatprep.subr.mxu0 0.0
    %906 = vmatpush1.xpose.msra.mxu0 0.0
    %907 = vmatprep.subr.mxu0 0.0
    %908 = vmatpush1.xpose.msra.mxu0 0.0
    %909 = vmatprep.subr.mxu0 0.0
    %910 = vmatpush1.xpose.msra.mxu0 0.0
    %911 = vmatprep.subr.mxu0 0.0
    %912 = vmatpush1.xpose.msra.mxu0 0.0
    %913 = vmatprep.subr.mxu0 0.0
    %914 = vmatpush1.xpose.msra.mxu0 0.0
    %915 = vmatprep.subr.mxu0 0.0
    %916 = vmatpush1.xpose.msra.mxu0 0.0
    %917 = vmatprep.subr.mxu0 0.0
    %918 = vmatpush1.xpose.msra.mxu0 0.0
    %919 = vmatprep.subr.mxu0 0.0
    %920 = vmatpush1.xpose.msra.mxu0 0.0
    %921 = vmatprep.mubr.f32.mxu0 0.0
    %v922 = vand.u32 %v587, 4294901760
    %v923 = vsub.f32 %v587, %v922
    %v924 = vand.u32 %v923, 4294901760
    %925 = vmatmul.mubr.f32.gmra.mrb[0].mxu0 %v924
    %v926 = vpop.f32.mrb[0].mxu0
    %v927 = vadd.f32 %v845, %v926
    %v928 = vpop.f32.mrb[0].mxu0
    %929 = vmatprep.mubr.f32.mxu0 0.0
    %v930 = vand.u32 %v590, 4294901760
    %v931 = vsub.f32 %v590, %v930
    %v932 = vand.u32 %v931, 4294901760
    %933 = vmatmul.mubr.f32.gmra.mrb[0].mxu0 %v932
    %v934 = vpop.f32.mrb[0].mxu0
    %v935 = vadd.f32 %v852, %v934
    %v936 = vpop.f32.mrb[0].mxu0
    %937 = vdwg.mxu0
    %938 = vmatprep.subr.mxu0 0.0
    %v939 = vand.u32 %v593, 4294901760
    %v940 = vsub.f32 %v593, %v939
    %v941 = vand.u32 %v940, 4294901760
    %942 = vmatpush1.xpose.msra.mxu0 %v941
    %943 = vmatprep.subr.mxu0 0.0
    %v944 = vand.u32 %v596, 4294901760
    %v945 = vsub.f32 %v596, %v944
    %v946 = vand.u32 %v945, 4294901760
    %947 = vmatpush1.xpose.msra.mxu0 %v946
    %948 = vmatprep.subr.mxu0 0.0
    %949 = vmatpush1.xpose.msra.mxu0 0.0
    %950 = vmatprep.subr.mxu0 0.0
    %951 = vmatpush1.xpose.msra.mxu0 0.0
    %952 = vmatprep.subr.mxu0 0.0
    %953 = vmatpush1.xpose.msra.mxu0 0.0
    %954 = vmatprep.subr.mxu0 0.0
    %955 = vmatpush1.xpose.msra.mxu0 0.0
    %956 = vmatprep.subr.mxu0 0.0
    %957 = vmatpush1.xpose.msra.mxu0 0.0
    %958 = vmatprep.subr.mxu0 0.0
    %959 = vmatpush1.xpose.msra.mxu0 0.0
    %960 = vmatprep.subr.mxu0 0.0
    %961 = vmatpush1.xpose.msra.mxu0 0.0
    %962 = vmatprep.subr.mxu0 0.0
    %963 = vmatpush1.xpose.msra.mxu0 0.0
    %964 = vmatprep.subr.mxu0 0.0
    %965 = vmatpush1.xpose.msra.mxu0 0.0
    %966 = vmatprep.subr.mxu0 0.0
    %967 = vmatpush1.xpose.msra.mxu0 0.0
    %968 = vmatprep.subr.mxu0 0.0
    %969 = vmatpush1.xpose.msra.mxu0 0.0
    %970 = vmatprep.subr.mxu0 0.0
    %971 = vmatpush1.xpose.msra.mxu0 0.0
    %972 = vmatprep.subr.mxu0 0.0
    %973 = vmatpush1.xpose.msra.mxu0 0.0
    %974 = vmatprep.subr.mxu0 0.0
    %975 = vmatpush1.xpose.msra.mxu0 0.0
    %976 = vmatprep.subr.mxu0 0.0
    %977 = vmatpush1.xpose.msra.mxu0 0.0
    %978 = vmatprep.subr.mxu0 0.0
    %979 = vmatpush1.xpose.msra.mxu0 0.0
    %980 = vmatprep.subr.mxu0 0.0
    %981 = vmatpush1.xpose.msra.mxu0 0.0
    %982 = vmatprep.subr.mxu0 0.0
    %983 = vmatpush1.xpose.msra.mxu0 0.0
    %984 = vmatprep.subr.mxu0 0.0
    %985 = vmatpush1.xpose.msra.mxu0 0.0
    %986 = vmatprep.subr.mxu0 0.0
    %987 = vmatpush1.xpose.msra.mxu0 0.0
    %988 = vmatprep.subr.mxu0 0.0
    %989 = vmatpush1.xpose.msra.mxu0 0.0
    %990 = vmatprep.subr.mxu0 0.0
    %991 = vmatpush1.xpose.msra.mxu0 0.0
    %992 = vmatprep.subr.mxu0 0.0
    %993 = vmatpush1.xpose.msra.mxu0 0.0
    %994 = vmatprep.subr.mxu0 0.0
    %995 = vmatpush1.xpose.msra.mxu0 0.0
    %996 = vmatprep.subr.mxu0 0.0
    %997 = vmatpush1.xpose.msra.mxu0 0.0
    %998 = vmatprep.subr.mxu0 0.0
    %999 = vmatpush1.xpose.msra.mxu0 0.0
    %1000 = vmatprep.subr.mxu0 0.0
    %1001 = vmatpush1.xpose.msra.mxu0 0.0
    %1002 = vmatprep.subr.mxu0 0.0
    %1003 = vmatpush1.xpose.msra.mxu0 0.0
    %1004 = vmatprep.subr.mxu0 0.0
    %1005 = vmatpush1.xpose.msra.mxu0 0.0
    %1006 = vmatprep.subr.mxu0 0.0
    %1007 = vmatpush1.xpose.msra.mxu0 0.0
    %1008 = vmatprep.mubr.f32.mxu0 0.0
    %v1009 = vand.u32 %v587, 4294901760
    %1010 = vmatmul.mubr.f32.gmra.mrb[0].mxu0 %v1009
    %v1011 = vpop.f32.mrb[0].mxu0
    %v1012 = vadd.f32 %v927, %v1011
    %v1013 = vpop.f32.mrb[0].mxu0
    %1014 = vmatprep.mubr.f32.mxu0 0.0
    %v1015 = vand.u32 %v590, 4294901760
    %1016 = vmatmul.mubr.f32.gmra.mrb[0].mxu0 %v1015
    %v1017 = vpop.f32.mrb[0].mxu0
    %v1018 = vadd.f32 %v935, %v1017
    %v1019 = vpop.f32.mrb[0].mxu0
    %1020 = vdwg.mxu0
    %1021 = vmatprep.subr.mxu0 0.0
    %v1022 = vand.u32 %v593, 4294901760
    %1023 = vmatpush1.xpose.msra.mxu0 %v1022
    %1024 = vmatprep.subr.mxu0 0.0
    %v1025 = vand.u32 %v596, 4294901760
    %1026 = vmatpush1.xpose.msra.mxu0 %v1025
    %1027 = vmatprep.subr.mxu0 0.0
    %1028 = vmatpush1.xpose.msra.mxu0 0.0
    %1029 = vmatprep.subr.mxu0 0.0
    %1030 = vmatpush1.xpose.msra.mxu0 0.0
    %1031 = vmatprep.subr.mxu0 0.0
    %1032 = vmatpush1.xpose.msra.mxu0 0.0
    %1033 = vmatprep.subr.mxu0 0.0
    %1034 = vmatpush1.xpose.msra.mxu0 0.0
    %1035 = vmatprep.subr.mxu0 0.0
    %1036 = vmatpush1.xpose.msra.mxu0 0.0
    %1037 = vmatprep.subr.mxu0 0.0
    %1038 = vmatpush1.xpose.msra.mxu0 0.0
    %1039 = vmatprep.subr.mxu0 0.0
    %1040 = vmatpush1.xpose.msra.mxu0 0.0
    %1041 = vmatprep.subr.mxu0 0.0
    %1042 = vmatpush1.xpose.msra.mxu0 0.0
    %1043 = vmatprep.subr.mxu0 0.0
    %1044 = vmatpush1.xpose.msra.mxu0 0.0
    %1045 = vmatprep.subr.mxu0 0.0
    %1046 = vmatpush1.xpose.msra.mxu0 0.0
    %1047 = vmatprep.subr.mxu0 0.0
    %1048 = vmatpush1.xpose.msra.mxu0 0.0
    %1049 = vmatprep.subr.mxu0 0.0
    %1050 = vmatpush1.xpose.msra.mxu0 0.0
    %1051 = vmatprep.subr.mxu0 0.0
    %1052 = vmatpush1.xpose.msra.mxu0 0.0
    %1053 = vmatprep.subr.mxu0 0.0
    %1054 = vmatpush1.xpose.msra.mxu0 0.0
    %1055 = vmatprep.subr.mxu0 0.0
    %1056 = vmatpush1.xpose.msra.mxu0 0.0
    %1057 = vmatprep.subr.mxu0 0.0
    %1058 = vmatpush1.xpose.msra.mxu0 0.0
    %1059 = vmatprep.subr.mxu0 0.0
    %1060 = vmatpush1.xpose.msra.mxu0 0.0
    %1061 = vmatprep.subr.mxu0 0.0
    %1062 = vmatpush1.xpose.msra.mxu0 0.0
    %1063 = vmatprep.subr.mxu0 0.0
    %1064 = vmatpush1.xpose.msra.mxu0 0.0
    %1065 = vmatprep.subr.mxu0 0.0
    %1066 = vmatpush1.xpose.msra.mxu0 0.0
    %1067 = vmatprep.subr.mxu0 0.0
    %1068 = vmatpush1.xpose.msra.mxu0 0.0
    %1069 = vmatprep.subr.mxu0 0.0
    %1070 = vmatpush1.xpose.msra.mxu0 0.0
    %1071 = vmatprep.subr.mxu0 0.0
    %1072 = vmatpush1.xpose.msra.mxu0 0.0
    %1073 = vmatprep.subr.mxu0 0.0
    %1074 = vmatpush1.xpose.msra.mxu0 0.0
    %1075 = vmatprep.subr.mxu0 0.0
    %1076 = vmatpush1.xpose.msra.mxu0 0.0
    %1077 = vmatprep.subr.mxu0 0.0
    %1078 = vmatpush1.xpose.msra.mxu0 0.0
    %1079 = vmatprep.subr.mxu0 0.0
    %1080 = vmatpush1.xpose.msra.mxu0 0.0
    %1081 = vmatprep.subr.mxu0 0.0
    %1082 = vmatpush1.xpose.msra.mxu0 0.0
    %1083 = vmatprep.subr.mxu0 0.0
    %1084 = vmatpush1.xpose.msra.mxu0 0.0
    %1085 = vmatprep.subr.mxu0 0.0
    %1086 = vmatpush1.xpose.msra.mxu0 0.0
    %1087 = vmatprep.mubr.f32.mxu0 0.0
    %v1088 = vand.u32 %v587, 4294901760
    %1089 = vmatmul.mubr.f32.gmra.mrb[0].mxu0 %v1088
    %v1090 = vpop.f32.mrb[0].mxu0
    %v1091 = vadd.f32 %v1012, %v1090
    %v1092 = vpop.f32.mrb[0].mxu0
    %1093 = vmatprep.mubr.f32.mxu0 0.0
    %v1094 = vand.u32 %v590, 4294901760
    %1095 = vmatmul.mubr.f32.gmra.mrb[0].mxu0 %v1094
    %v1096 = vpop.f32.mrb[0].mxu0
    %v1097 = vadd.f32 %v1018, %v1096
    %v1098 = vpop.f32.mrb[0].mxu0
    %1099 = vdwg.mxu0
    %v1100 = vmul.f32 %v562, %v1091
    %v1101 = vmul.f32 %v568, %v1097
    %v1102 = vsel %vm585, %v1100, 0.0
    %v1103 = vsel %vm585, %v1101, 0.0
    %v1104 = vadd.f32 %v1102, %v1103
    %v1105 = vrot.slane %v1104, 4
    %v1106 = vadd.f32 %v1104, %v1105
    %v1107 = vrot.slane %v1106, 2
    %v1108 = vadd.f32 %v1106, %v1107
    %v1109 = vrot.slane %v1108, 1
    %v1110 = vadd.f32 %v1108, %v1109
    %vm1111 = vcmask 122880
    %1112 = vst.msk [vmem:[#allocation5] sm:$0x1] %vm1111, %v1110
    // Predicated region
    $region30: #{tpu_custom_call.1} parent=1 // pred_check
      _
    $region31: #{tpu_custom_call.1} parent=1 // pred_check_branch
      %1114 = sbr.rel (0) target = $region33
    $region32: #{tpu_custom_call.1} parent=1 // pred_region
      %s1116 = ssub.s32 16, 16
      %1117 = vsyncadd [#allocation4], %s1116
      %s1119 = sshll.u32 [#allocation5], 4
      %s1120 = int_to_ptr.vmem [resolvable:$true] %s1119
      %1122 = dma.vmem_to_hbm [thread:$0]  %s1120, 16, %s6, [#allocation4]
    $region33: #{tpu_custom_call.1} parent=1 // pred_fallthru
      _
    // Predicated region
    $region34: #{tpu_custom_call.1} parent=1 // pred_check
      _
    $region35: #{tpu_custom_call.1} parent=1 // pred_check_branch
      %1124 = sbr.rel (0) target = $region37
    $region36: #{tpu_custom_call.1} parent=1 // pred_region
      %1125 = dma.done [#allocation4], 16
    $region37: #{tpu_custom_call.1} parent=1 // pred_fallthru
      _
    %1126 = vsyncpa [#allocation3], 1
    %1127 = vsyncpa [#allocation4], 1

</llo_original>
